<compile_context>
chip_gen: v7x
topology: tpu7x:2x2x1
jax: 0.10.0
libtpu: 0.0.40
codegen_flags: <defaults>
</compile_context>

<pallas_src>
import jax
import jax.numpy as jnp
from jax.experimental import pallas as pl
from jax.experimental.pallas import tpu as pltpu

# ----- sizes (lane/sublane aligned: multiples of (8, 128)) -------------------
B = 256       # batch (small but MXU-row friendly; tiled below)
TB = 128      # batch tile (rows per grid step)
D_IN = 128    # input features
HIDDEN = 128  # encoder width
D_OUT = 128   # head output width


def ensemble_kernel(x_ref, w1_ref, b_ref, w2_ref, o_ref):
    # modelA.encode: Linear (bf16 MXU operands, f32 accumulation) + bias + ReLU.
    x_bf = x_ref[...].astype(jnp.bfloat16)
    w1_bf = w1_ref[...].astype(jnp.bfloat16)
    h = jnp.dot(x_bf, w1_bf, preferred_element_type=jnp.float32)
    h = h + b_ref[0:1, :]            # b1: (1, HIDDEN) f32, broadcasts over rows
    h = jnp.maximum(h, 0.0)          # f32 epilogue

    # modelB: Linear head (re-quantize intermediate to bf16 for the MXU).
    w2_bf = w2_ref[...].astype(jnp.bfloat16)
    y = jnp.dot(h.astype(jnp.bfloat16), w2_bf,
                preferred_element_type=jnp.float32)
    y = y + b_ref[1:2, :]            # b2: (1, D_OUT) f32
    o_ref[...] = y.astype(o_ref.dtype)


def my_ensemble_forward(x, w1, b1, w2, b2, *, tb=TB):
    """x: (B, D_IN) f32 -> (B, D_OUT) f32.

    Batch-tiled: grid=(B//tb,). Weights/biases stay VMEM-resident (constant
    index_map); x / out tiles are streamed + double-buffered by Pallas.
    """
    bsz, d_in = x.shape
    hidden = w1.shape[1]
    d_out = w2.shape[1]
    assert hidden == d_out, "bias packing assumes HIDDEN == D_OUT"
    if bsz % tb != 0:
        tb = bsz  # fall back to a single tile for odd batch sizes

    # Pack the two biases into one (2, HIDDEN) f32 array (single tiny DMA).
    b_packed = jnp.concatenate(
        [b1.reshape(1, hidden), b2.reshape(1, d_out)], axis=0)

    flops = 2 * bsz * d_in * hidden + 2 * bsz * hidden * d_out
    bytes_accessed = (x.size * 4 + w1.size * 4 + w2.size * 4
                      + b_packed.size * 4 + bsz * d_out * 4)

    return pl.pallas_call(
        ensemble_kernel,
        out_shape=jax.ShapeDtypeStruct((bsz, d_out), jnp.float32),
        grid=(bsz // tb,),
        in_specs=[
            pl.BlockSpec((tb, d_in), lambda i: (i, 0)),       # x: streamed
            pl.BlockSpec((d_in, hidden), lambda i: (0, 0)),   # w1: resident
            pl.BlockSpec((2, hidden), lambda i: (0, 0)),      # b1|b2: resident
            pl.BlockSpec((hidden, d_out), lambda i: (0, 0)),  # w2: resident
        ],
        out_specs=pl.BlockSpec((tb, d_out), lambda i: (i, 0)),
        compiler_params=pltpu.CompilerParams(
            dimension_semantics=("parallel",)),
        cost_estimate=pl.CostEstimate(
            flops=flops, transcendentals=0, bytes_accessed=bytes_accessed),
    )(x, w1, b_packed, w2)


if __name__ == "__main__":
    key = jax.random.PRNGKey(0)
    kx, kw1, kb1, kw2, kb2 = jax.random.split(key, 5)

    # Deterministic synthetic inputs / parameters.
    # TODO(synk): modelA / modelB internals are unspecified in the PyTorch spec;
    # a Linear+ReLU encoder and a Linear head stand in for them here.
    x = jax.random.normal(kx, (B, D_IN), dtype=jnp.float32)
    w1 = jax.random.normal(kw1, (D_IN, HIDDEN), dtype=jnp.float32) * 0.02
    b1 = jax.random.normal(kb1, (1, HIDDEN), dtype=jnp.float32) * 0.02
    w2 = jax.random.normal(kw2, (HIDDEN, D_OUT), dtype=jnp.float32) * 0.02
    b2 = jax.random.normal(kb2, (1, D_OUT), dtype=jnp.float32) * 0.02

    out = my_ensemble_forward(x, w1, b1, w2, b2)
    out = jax.block_until_ready(out)

    # Reference in plain JAX with the same bf16-operand / f32-accumulate math.
    x_bf = x.astype(jnp.bfloat16)
    w1_bf = w1.astype(jnp.bfloat16)
    w2_bf = w2.astype(jnp.bfloat16)
    h_ref = jnp.dot(x_bf, w1_bf, preferred_element_type=jnp.float32) + b1
    h_ref = jnp.maximum(h_ref, 0.0)
    ref = jnp.dot(h_ref.astype(jnp.bfloat16), w2_bf,
                  preferred_element_type=jnp.float32) + b2

    assert out.shape == (B, D_OUT)
    assert jnp.allclose(out, ref, atol=2e-2, rtol=2e-2)

    print("KERNEL_OK")
</pallas_src>

<mosaic_0001>
module attributes {stable_mosaic.version = 11 : i64} {
  func.func @ensemble_kernel(%arg0: i32, %arg1: memref<128x128xf32, #tpu.memory_space<vmem>>, %arg2: memref<128x128xf32, #tpu.memory_space<vmem>>, %arg3: memref<2x128xf32, #tpu.memory_space<vmem>>, %arg4: memref<128x128xf32, #tpu.memory_space<vmem>>, %arg5: memref<128x128xf32, #tpu.memory_space<vmem>>) attributes {dimension_semantics = [#tpu.dimension_semantics<parallel>], iteration_bounds = array<i64: 2>, scalar_prefetch = 0 : i64, scratch_operands = 0 : i64, tpu.core_type = #tpu.core_type<tc>, window_params = [{transform_indices = @transform_0, window_bounds = array<i64: 128, 128>}, {pipeline_mode = #tpu.pipeline_mode<synchronous>, transform_indices = @transform_1, window_bounds = array<i64: 128, 128>}, {pipeline_mode = #tpu.pipeline_mode<synchronous>, transform_indices = @transform_2, window_bounds = array<i64: 2, 128>}, {pipeline_mode = #tpu.pipeline_mode<synchronous>, transform_indices = @transform_3, window_bounds = array<i64: 128, 128>}, {transform_indices = @transform_4, window_bounds = array<i64: 128, 128>}]} {
    %c0 = arith.constant 0 : index
    %c0_0 = arith.constant 0 : index
    %0 = vector.load %arg1[%c0, %c0_0] : memref<128x128xf32, #tpu.memory_space<vmem>>, vector<128x128xf32>
    %1 = arith.truncf %0 : vector<128x128xf32> to vector<128x128xbf16>
    %c0_1 = arith.constant 0 : index
    %c0_2 = arith.constant 0 : index
    %2 = vector.load %arg2[%c0_1, %c0_2] : memref<128x128xf32, #tpu.memory_space<vmem>>, vector<128x128xf32>
    %3 = arith.truncf %2 : vector<128x128xf32> to vector<128x128xbf16>
    %cst = arith.constant dense<0.000000e+00> : vector<128x128xf32>
    %4 = tpu.matmul %1, %3, %cst {dimension_numbers = #tpu.dot_dimension_numbers<[1], [0], [0], [1], [0, 0, 1, 1], [], []>} : vector<128x128xbf16>, vector<128x128xbf16>, vector<128x128xf32> -> vector<128x128xf32>
    %c0_3 = arith.constant 0 : index
    %c0_4 = arith.constant 0 : index
    %5 = vector.load %arg3[%c0_3, %c0_4] : memref<2x128xf32, #tpu.memory_space<vmem>>, vector<1x128xf32>
    %6 = vector.broadcast %5 : vector<1x128xf32> to vector<128x128xf32>
    %7 = arith.addf %4, %6 : vector<128x128xf32>
    %cst_5 = arith.constant 0.000000e+00 : f32
    %8 = vector.broadcast %cst_5 : f32 to vector<128x128xf32>
    %9 = arith.maximumf %7, %8 : vector<128x128xf32>
    %c0_6 = arith.constant 0 : index
    %c0_7 = arith.constant 0 : index
    %10 = vector.load %arg4[%c0_6, %c0_7] : memref<128x128xf32, #tpu.memory_space<vmem>>, vector<128x128xf32>
    %11 = arith.truncf %10 : vector<128x128xf32> to vector<128x128xbf16>
    %12 = arith.truncf %9 : vector<128x128xf32> to vector<128x128xbf16>
    %cst_8 = arith.constant dense<0.000000e+00> : vector<128x128xf32>
    %13 = tpu.matmul %12, %11, %cst_8 {dimension_numbers = #tpu.dot_dimension_numbers<[1], [0], [0], [1], [0, 0, 1, 1], [], []>} : vector<128x128xbf16>, vector<128x128xbf16>, vector<128x128xf32> -> vector<128x128xf32>
    %c1 = arith.constant 1 : index
    %c0_9 = arith.constant 0 : index
    %14 = vector.load %arg3[%c1, %c0_9] : memref<2x128xf32, #tpu.memory_space<vmem>>, vector<1x128xf32>
    %15 = vector.broadcast %14 : vector<1x128xf32> to vector<128x128xf32>
    %16 = arith.addf %13, %15 : vector<128x128xf32>
    %c0_10 = arith.constant 0 : index
    %c0_11 = arith.constant 0 : index
    %17 = vector.load %arg5[%c0_10, %c0_11] : memref<128x128xf32, #tpu.memory_space<vmem>>, vector<128x128xf32>
    tpu.vector_store %arg5[%c0_10, %c0_11], %16 {strides = array<i32>} : memref<128x128xf32, #tpu.memory_space<vmem>>, vector<128x128xf32>,
    return
  }
  func.func @transform_0(%arg0: i32) -> (i32, i32) {
    %c0_i32 = arith.constant 0 : i32
    %c0_i32_0 = arith.constant 0 : i32
    return %arg0, %c0_i32 : i32, i32
  }
  func.func @transform_1(%arg0: i32) -> (i32, i32) {
    %c0_i32 = arith.constant 0 : i32
    %c0_i32_0 = arith.constant 0 : i32
    %c0_i32_1 = arith.constant 0 : i32
    return %c0_i32, %c0_i32_0 : i32, i32
  }
  func.func @transform_2(%arg0: i32) -> (i32, i32) {
    %c0_i32 = arith.constant 0 : i32
    %c0_i32_0 = arith.constant 0 : i32
    %c0_i32_1 = arith.constant 0 : i32
    return %c0_i32, %c0_i32_0 : i32, i32
  }
  func.func @transform_3(%arg0: i32) -> (i32, i32) {
    %c0_i32 = arith.constant 0 : i32
    %c0_i32_0 = arith.constant 0 : i32
    %c0_i32_1 = arith.constant 0 : i32
    return %c0_i32, %c0_i32_0 : i32, i32
  }
  func.func @transform_4(%arg0: i32) -> (i32, i32) {
    %c0_i32 = arith.constant 0 : i32
    %c0_i32_0 = arith.constant 0 : i32
    return %arg0, %c0_i32 : i32, i32
  }
}

</mosaic_0001>

<llo_original>
// kernel: tpu_custom_call.1
$region0: #{tpu_custom_call.1}
  #allocation0 [shape = 'u32[]', space=smem, size = 0x4, offset = 0x4, fixed_abs, tag = 'smem constant byte address 0x4 - core index']
  #allocation1 [shape = 'u32[144,128]{1,0:T(1,128)}', space=vmem, size = 0x12000, scoped, tag = 'internal scratch']
  %s0 = inlined_call_operand.hbm [shape: f32[256,128], index: 0, kind: input, shape index: {}]
  %s1 = inlined_call_operand.hbm [shape: f32[128,128], index: 1, kind: input, shape index: {}]
  %s2 = inlined_call_operand.vmem [shape: f32[2,128], index: 2, kind: input, shape index: {}]
  %s3 = inlined_call_operand.hbm [shape: f32[128,128], index: 3, kind: input, shape index: {}]
  %s4 = inlined_call_operand.hbm [shape: f32[256,128], index: 4, kind: output, shape index: {}]
  %s5 = sld [smem:[#allocation0]]
  $region61: #{tpu_custom_call.1} parent=0
    _
  %s7 = ssub.s32 1, %s5
  %s8 = scalar_select 0, %s7, %s5
  $region1: #{tpu_custom_call.1} parent=0
    #allocation2 [shape = 'u8[131072]{0}', space=vmem, size = 0x20000, scoped, tag = 'input window, operand 0']
    #allocation3 [shape = 's32[2]{0}', space=sflag, size = 0x8, scoped, tag = 'scoped memory for tpu_custom_call.1']
    #allocation4 [shape = 's32[2]{0}', space=sflag, size = 0x8, scoped, tag = 'scoped memory for tpu_custom_call.1']
    #allocation5 [shape = 'u8[65536]{0}', space=vmem, size = 0x10000, scoped, tag = 'input window, operand 1, single buffered']
    #allocation6 [shape = 's32[1]{0}', space=sflag, size = 0x4, scoped, tag = 'scoped memory for tpu_custom_call.1']
    #allocation7 [shape = 'u8[65536]{0}', space=vmem, size = 0x10000, scoped, tag = 'input window, operand 3, single buffered']
    #allocation8 [shape = 'u8[131072]{0}', space=vmem, size = 0x20000, scoped, tag = 'output window, operand 0']
    %9 = vsyncpa [#allocation3], 0
    %s10 = scalar_lea.sflag [#allocation3], 1
    %11 = vsyncpa %s10, 0
    %12 = vsyncpa [#allocation6], 0
    %13 = vsyncpa [#allocation4], 0
    %s14 = scalar_lea.sflag [#allocation4], 1
    %15 = vsyncpa %s14, 0
    loop: start=0, step=1, limit=4
    $region2: #{tpu_custom_call.1} parent=1 // loop_pre_header
      _
    $region3: #{tpu_custom_call.1} parent=1 // loop_header
      %s17 = sphi 0, %s21
      %p18 = scmp.ge.s32.totalorder %s17, 4
      %s27 = sphi 0, %s29
      %s30 = sphi 0, %s27
      %s31 = sphi 0, %s30
      %s47 = sphi 0, %s31
      %s51 = sphi 0, %s51
      %s53 = sphi 0, %s51
      %s54 = sphi 0, %s53
      %s68 = sphi 0, %s54
      %s72 = sphi 0, %s72
      %s74 = sphi 0, %s72
      %s75 = sphi 0, %s74
      %s89 = sphi 0, %s75
      %s93 = sphi 0, %s93
      %s95 = sphi 0, %s93
      %s96 = sphi 0, %s95
      %s110 = sphi 0, %s96
      %s116 = sphi 0, %s118
      %s119 = sphi 0, %s116
      %s120 = sphi 0, %s119
      %s136 = sphi 0, %s120
    $region4: #{tpu_custom_call.1} parent=1 // loop_header_branch
      %20 = sbr.rel (%p18) target = $region8
    $region5: #{tpu_custom_call.1} parent=1 // loop_body
      %s22 = ssub.s32 %s17, 1
      %s23 = ssub.s32 %s17, 2
      %s24 = sadd.s32 %s17, 1
      %s25 = ssub.s32 %s17, %s24
      %p26 = scmp.eq.s32.totalorder %s25, 0
      %s28 = sadd.s32 %s27, 1
      %s29 = scalar_select %p26, %s27, %s28
      %p32 = pneg %p26
      %p33 = scmp.eq.s32.totalorder %s17, 1
      %p34 = por %p32, %p33
      %p35 = scmp.ne.s32.totalorder %s27, %s30
      %p36 = scmp.eq.s32.totalorder %s17, 0
      %p37 = por %p35, %p36
      %p38 = scmp.ne.s32.totalorder %s27, %s30
      %p39 = scmp.eq.s32.totalorder %s22, 1
      %p40 = por %p38, %p39
      %p41 = scmp.ne.s32.totalorder %s30, %s31
      %p42 = scmp.eq.s32.totalorder %s22, 0
      %p43 = por %p41, %p42
      %p44 = scmp.ne.s32.totalorder %s30, %s31
      %p45 = scmp.eq.s32.totalorder %s23, 1
      %p46 = por %p44, %p45
      %p48 = scmp.ne.s32.totalorder %s31, %s47
      %p49 = scmp.eq.s32.totalorder %s23, 0
      %p50 = por %p48, %p49
      %s52 = sadd.s32 %s51, 1
      %p55 = scmp.eq.s32.totalorder %s17, 1
      %p56 = scmp.ne.s32.totalorder %s51, %s53
      %p57 = scmp.eq.s32.totalorder %s17, 0
      %p58 = por %p56, %p57
      %p59 = scmp.ne.s32.totalorder %s51, %s53
      %p60 = scmp.eq.s32.totalorder %s22, 1
      %p61 = por %p59, %p60
      %p62 = scmp.ne.s32.totalorder %s53, %s54
      %p63 = scmp.eq.s32.totalorder %s22, 0
      %p64 = por %p62, %p63
      %p65 = scmp.ne.s32.totalorder %s53, %s54
      %p66 = scmp.eq.s32.totalorder %s23, 1
      %p67 = por %p65, %p66
      %p69 = scmp.ne.s32.totalorder %s54, %s68
      %p70 = scmp.eq.s32.totalorder %s23, 0
      %p71 = por %p69, %p70
      %s73 = sadd.s32 %s72, 1
      %p76 = scmp.eq.s32.totalorder %s17, 1
      %p77 = scmp.ne.s32.totalorder %s72, %s74
      %p78 = scmp.eq.s32.totalorder %s17, 0
      %p79 = por %p77, %p78
      %p80 = scmp.ne.s32.totalorder %s72, %s74
      %p81 = scmp.eq.s32.totalorder %s22, 1
      %p82 = por %p80, %p81
      %p83 = scmp.ne.s32.totalorder %s74, %s75
      %p84 = scmp.eq.s32.totalorder %s22, 0
      %p85 = por %p83, %p84
      %p86 = scmp.ne.s32.totalorder %s74, %s75
      %p87 = scmp.eq.s32.totalorder %s23, 1
      %p88 = por %p86, %p87
      %p90 = scmp.ne.s32.totalorder %s75, %s89
      %p91 = scmp.eq.s32.totalorder %s23, 0
      %p92 = por %p90, %p91
      %s94 = sadd.s32 %s93, 1
      %p97 = scmp.eq.s32.totalorder %s17, 1
      %p98 = scmp.ne.s32.totalorder %s93, %s95
      %p99 = scmp.eq.s32.totalorder %s17, 0
      %p100 = por %p98, %p99
      %p101 = scmp.ne.s32.totalorder %s93, %s95
      %p102 = scmp.eq.s32.totalorder %s22, 1
      %p103 = por %p101, %p102
      %p104 = scmp.ne.s32.totalorder %s95, %s96
      %p105 = scmp.eq.s32.totalorder %s22, 0
      %p106 = por %p104, %p105
      %p107 = scmp.ne.s32.totalorder %s95, %s96
      %p108 = scmp.eq.s32.totalorder %s23, 1
      %p109 = por %p107, %p108
      %p111 = scmp.ne.s32.totalorder %s96, %s110
      %p112 = scmp.eq.s32.totalorder %s23, 0
      %p113 = por %p111, %p112
      %s114 = ssub.s32 %s17, %s24
      %p115 = scmp.eq.s32.totalorder %s114, 0
      %s117 = sadd.s32 %s116, 1
      %s118 = scalar_select %p115, %s116, %s117
      %p121 = pneg %p115
      %p122 = scmp.eq.s32.totalorder %s17, 1
      %p123 = por %p121, %p122
      %p124 = scmp.ne.s32.totalorder %s116, %s119
      %p125 = scmp.eq.s32.totalorder %s17, 0
      %p126 = por %p124, %p125
      %p127 = scmp.ne.s32.totalorder %s116, %s119
      %p128 = scmp.eq.s32.totalorder %s22, 1
      %p129 = por %p127, %p128
      %p130 = scmp.ne.s32.totalorder %s119, %s120
      %p131 = scmp.eq.s32.totalorder %s22, 0
      %p132 = por %p130, %p131
      %p133 = scmp.ne.s32.totalorder %s119, %s120
      %p134 = scmp.eq.s32.totalorder %s23, 1
      %p135 = por %p133, %p134
      %p137 = scmp.ne.s32.totalorder %s120, %s136
      %p138 = scmp.eq.s32.totalorder %s23, 0
      %p139 = por %p137, %p138
      %p140 = scmp.le.s32.totalorder 1, %s17
      %p141 = scmp.lt.s32.totalorder %s17, 3
      %p142 = pnand %p140, %p141
      %p143 = pneg %p142
      // Predicated region
      $region9: #{tpu_custom_call.1} parent=5 // pred_check
        _
      $region10: #{tpu_custom_call.1} parent=5 // pred_check_branch
        %145 = sbr.rel (%p142) target = $region12
      $region11: #{tpu_custom_call.1} parent=5 // pred_region
        %s146 = ssub.s32 %s17, 1
        // Predicated region
        $region13: #{tpu_custom_call.1} parent=11 // pred_check
          %p147 = pneg %p64
        $region14: #{tpu_custom_call.1} parent=11 // pred_check_branch
          %149 = sbr.rel (%p147) target = $region16
        $region15: #{tpu_custom_call.1} parent=11 // pred_region
          %s151 = ssub.s32 2048, 2048
          %152 = vsyncadd [#allocation6], %s151
          %s153 = sshll.u32 [#allocation5], 4
          %s154 = int_to_ptr.vmem [resolvable:$true] %s153
          %159 = dma.hbm_to_vmem [thread:$0]  %s1, 2048, %s154, [#allocation6], 128, 128, 8
        $region16: #{tpu_custom_call.1} parent=11 // pred_fallthru
          _
        // Predicated region
        $region17: #{tpu_custom_call.1} parent=11 // pred_check
          %p160 = pneg %p85
        $region18: #{tpu_custom_call.1} parent=11 // pred_check_branch
          %162 = sbr.rel (%p160) target = $region20
        $region19: #{tpu_custom_call.1} parent=11 // pred_region
          _
        $region20: #{tpu_custom_call.1} parent=11 // pred_fallthru
          _
        // Predicated region
        $region21: #{tpu_custom_call.1} parent=11 // pred_check
          %p163 = pneg %p106
        $region22: #{tpu_custom_call.1} parent=11 // pred_check_branch
          %165 = sbr.rel (%p163) target = $region24
        $region23: #{tpu_custom_call.1} parent=11 // pred_region
          %s167 = ssub.s32 2048, 2048
          %168 = vsyncadd [#allocation6], %s167
          %s169 = sshll.u32 [#allocation7], 4
          %s170 = int_to_ptr.vmem [resolvable:$true] %s169
          %175 = dma.hbm_to_vmem [thread:$0]  %s3, 2048, %s170, [#allocation6], 128, 128, 8
        $region24: #{tpu_custom_call.1} parent=11 // pred_fallthru
          _
      $region12: #{tpu_custom_call.1} parent=5 // pred_fallthru
        _
      %p176 = scmp.lt.s32.totalorder %s17, 2
      // Predicated region
      $region25: #{tpu_custom_call.1} parent=5 // pred_check
        %p177 = pneg %p176
      $region26: #{tpu_custom_call.1} parent=5 // pred_check_branch
        %179 = sbr.rel (%p177) target = $region28
      $region27: #{tpu_custom_call.1} parent=5 // pred_region
        // Predicated region
        $region29: #{tpu_custom_call.1} parent=27 // pred_check
          %p180 = pneg %p37
        $region30: #{tpu_custom_call.1} parent=27 // pred_check_branch
          %182 = sbr.rel (%p180) target = $region32
        $region31: #{tpu_custom_call.1} parent=27 // pred_region
          %s183 = sand.u32 %s27, 1
          %s184 = scalar_lea.sflag [#allocation3], %s183
          %s185 = sand.u32 %s27, 1
          %s186 = smul.addr %s185, 128
          %s187 = scalar_lea.vmem [#allocation2], %s186
          %s188 = smul.u32 16, %s17
          %s190 = ssub.s32 2048, 2048
          %191 = vsyncadd %s184, %s190
          %s192 = smul.addr %s188, 128
          %s193 = scalar_lea.hbm %s0, %s192
          %s194 = sshll.u32 %s187, 4
          %s195 = int_to_ptr.vmem [resolvable:$true] %s194
          %200 = dma.hbm_to_vmem [thread:$0]  %s193, 2048, %s195, %s184, 128, 128, 8
        $region32: #{tpu_custom_call.1} parent=27 // pred_fallthru
          _
      $region28: #{tpu_custom_call.1} parent=5 // pred_fallthru
        _
      %p201 = scmp.le.s32.totalorder 1, %s17
      %p202 = scmp.lt.s32.totalorder %s17, 3
      %p203 = pnand %p201, %p202
      %p204 = pneg %p203
      // Predicated region
      $region33: #{tpu_custom_call.1} parent=5 // pred_check
        _
      $region34: #{tpu_custom_call.1} parent=5 // pred_check_branch
        %206 = sbr.rel (%p203) target = $region36
      $region35: #{tpu_custom_call.1} parent=5 // pred_region
        %s207 = ssub.s32 %s17, 1
        %s208 = sand.u32 %s30, 1
        %s209 = scalar_lea.sflag [#allocation3], %s208
        %s210 = sand.u32 %s30, 1
        %s211 = smul.addr %s210, 128
        %s212 = scalar_lea.vmem [#allocation2], %s211
        // Predicated region
        $region37: #{tpu_custom_call.1} parent=35 // pred_check
          %p213 = pneg %p43
        $region38: #{tpu_custom_call.1} parent=35 // pred_check_branch
          %215 = sbr.rel (%p213) target = $region40
        $region39: #{tpu_custom_call.1} parent=35 // pred_region
          %216 = dma.done %s209, 2048
        $region40: #{tpu_custom_call.1} parent=35 // pred_fallthru
          _
        // Predicated region
        $region41: #{tpu_custom_call.1} parent=35 // pred_check
          %p217 = pneg %p64
        $region42: #{tpu_custom_call.1} parent=35 // pred_check_branch
          %219 = sbr.rel (%p217) target = $region44
        $region43: #{tpu_custom_call.1} parent=35 // pred_region
          %220 = dma.done [#allocation6], 2048
        $region44: #{tpu_custom_call.1} parent=35 // pred_fallthru
          _
        // Predicated region
        $region45: #{tpu_custom_call.1} parent=35 // pred_check
          %p221 = pneg %p106
        $region46: #{tpu_custom_call.1} parent=35 // pred_check_branch
          %223 = sbr.rel (%p221) target = $region48
        $region47: #{tpu_custom_call.1} parent=35 // pred_region
          %224 = dma.done [#allocation6], 2048
        $region48: #{tpu_custom_call.1} parent=35 // pred_fallthru
          _
        %s225 = sand.u32 %s30, 1
        %s226 = scalar_lea.sflag [#allocation3], %s225
        %s227 = sand.u32 %s30, 1
        %s228 = smul.addr %s227, 128
        %s229 = scalar_lea.vmem [#allocation2], %s228
        %p230 = pneg %p43
        %p231 = pneg %p40
        %p232 = pneg %p64
        %p233 = pneg %p61
        %p234 = pneg %p85
        %p235 = pneg %p82
        %p236 = pneg %p106
        %p237 = pneg %p103
        %p238 = pneg %p132
        %p239 = pneg %p129
        %s240 = sand.u32 %s119, 1
        %s241 = scalar_lea.sflag [#allocation4], %s240
        %s242 = sand.u32 %s119, 1
        %s243 = smul.addr %s242, 128
        %s244 = scalar_lea.vmem [#allocation8], %s243
        %s245 = smul.u32 16, %s22
        %s246 = smul.u32 16, %s22
        %v248 = vld [vmem:[%s212] sm:$0xff]
        %v249 = vld [vmem:[%s212 + $0x8] sm:$0xff]
        %v250 = vld [vmem:[%s212 + $0x10] sm:$0xff]
        %v251 = vld [vmem:[%s212 + $0x18] sm:$0xff]
        %v252 = vld [vmem:[%s212 + $0x20] sm:$0xff]
        %v253 = vld [vmem:[%s212 + $0x28] sm:$0xff]
        %v254 = vld [vmem:[%s212 + $0x30] sm:$0xff]
        %v255 = vld [vmem:[%s212 + $0x38] sm:$0xff]
        %v256 = vld [vmem:[%s212 + $0x40] sm:$0xff]
        %v257 = vld [vmem:[%s212 + $0x48] sm:$0xff]
        %v258 = vld [vmem:[%s212 + $0x50] sm:$0xff]
        %v259 = vld [vmem:[%s212 + $0x58] sm:$0xff]
        %v260 = vld [vmem:[%s212 + $0x60] sm:$0xff]
        %v261 = vld [vmem:[%s212 + $0x68] sm:$0xff]
        %v262 = vld [vmem:[%s212 + $0x70] sm:$0xff]
        %v263 = vld [vmem:[%s212 + $0x78] sm:$0xff]
        %v264 = vpack.c.bf16 %v249, %v248
        %v265 = vpack.c.bf16 %v251, %v250
        %v266 = vpack.c.bf16 %v253, %v252
        %v267 = vpack.c.bf16 %v255, %v254
        %v268 = vpack.c.bf16 %v257, %v256
        %v269 = vpack.c.bf16 %v259, %v258
        %v270 = vpack.c.bf16 %v261, %v260
        %v271 = vpack.c.bf16 %v263, %v262
        %v272 = vld [vmem:[#allocation5] sm:$0xff]
        %v273 = vld [vmem:[#allocation5 + $0x8] sm:$0xff]
        %v274 = vld [vmem:[#allocation5 + $0x10] sm:$0xff]
        %v275 = vld [vmem:[#allocation5 + $0x18] sm:$0xff]
        %v276 = vld [vmem:[#allocation5 + $0x20] sm:$0xff]
        %v277 = vld [vmem:[#allocation5 + $0x28] sm:$0xff]
        %v278 = vld [vmem:[#allocation5 + $0x30] sm:$0xff]
        %v279 = vld [vmem:[#allocation5 + $0x38] sm:$0xff]
        %v280 = vld [vmem:[#allocation5 + $0x40] sm:$0xff]
        %v281 = vld [vmem:[#allocation5 + $0x48] sm:$0xff]
        %v282 = vld [vmem:[#allocation5 + $0x50] sm:$0xff]
        %v283 = vld [vmem:[#allocation5 + $0x58] sm:$0xff]
        %v284 = vld [vmem:[#allocation5 + $0x60] sm:$0xff]
        %v285 = vld [vmem:[#allocation5 + $0x68] sm:$0xff]
        %v286 = vld [vmem:[#allocation5 + $0x70] sm:$0xff]
        %v287 = vld [vmem:[#allocation5 + $0x78] sm:$0xff]
        %v288 = vpack.c.bf16 %v273, %v272
        %v289 = vpack.c.bf16 %v275, %v274
        %v290 = vpack.c.bf16 %v277, %v276
        %v291 = vpack.c.bf16 %v279, %v278
        %v292 = vpack.c.bf16 %v281, %v280
        %v293 = vpack.c.bf16 %v283, %v282
        %v294 = vpack.c.bf16 %v285, %v284
        %v295 = vpack.c.bf16 %v287, %v286
        %v296 = vld [vmem:[%s2] sm:$0x1]
        %v297 = vlaneseq
        %v298 = vshrl.u32 %v297, 7
        %v299 = vsub.s32 0, %v298
        %v300 = vrot.slane %v296, %v299
        %301 = vmatprep.subr.bf16.mxu0 0
        %302 = vmatpush1.bf16.msra.mxu0 %v288
        %303 = vmatprep.subr.bf16.mxu0 0
        %304 = vmatpush1.bf16.msra.mxu0 %v289
        %305 = vmatprep.subr.bf16.mxu0 0
        %306 = vmatpush1.bf16.msra.mxu0 %v290
        %307 = vmatprep.subr.bf16.mxu0 0
        %308 = vmatpush1.bf16.msra.mxu0 %v291
        %309 = vmatprep.subr.bf16.mxu0 0
        %310 = vmatpush1.bf16.msra.mxu0 %v292
        %311 = vmatprep.subr.bf16.mxu0 0
        %312 = vmatpush1.bf16.msra.mxu0 %v293
        %313 = vmatprep.subr.bf16.mxu0 0
        %314 = vmatpush1.bf16.msra.mxu0 %v294
        %315 = vmatprep.subr.bf16.mxu0 0
        %316 = vmatpush1.bf16.msra.mxu0 %v295
        %317 = vmatprep.subr.bf16.mxu0 0
        %318 = vmatpush1.bf16.msra.mxu0 0
        %319 = vmatprep.subr.bf16.mxu0 0
        %320 = vmatpush1.bf16.msra.mxu0 0
        %321 = vmatprep.subr.bf16.mxu0 0
        %322 = vmatpush1.bf16.msra.mxu0 0
        %323 = vmatprep.subr.bf16.mxu0 0
        %324 = vmatpush1.bf16.msra.mxu0 0
        %325 = vmatprep.subr.bf16.mxu0 0
        %326 = vmatpush1.bf16.msra.mxu0 0
        %327 = vmatprep.subr.bf16.mxu0 0
        %328 = vmatpush1.bf16.msra.mxu0 0
        %329 = vmatprep.subr.bf16.mxu0 0
        %330 = vmatpush1.bf16.msra.mxu0 0
        %331 = vmatprep.subr.bf16.mxu0 0
        %332 = vmatpush1.bf16.msra.mxu0 0
        %333 = vmatprep.mubr.bf16.mxu0 0
        %334 = vmatmul.mubr.bf16.gmra.mrb[0].mxu0 %v264
        %v335 = vpop.f32.mrb[0].mxu0
        %v336 = vadd.f32 %v300, %v335
        %v337 = vpop.f32.mrb[0].mxu0
        %v338 = vpop.f32.mrb[0].mxu0
        %v339 = vadd.f32 %v300, %v338
        %v340 = vpop.f32.mrb[0].mxu0
        %341 = vmatprep.mubr.bf16.mxu0 0
        %342 = vmatmul.mubr.bf16.gmra.mrb[0].mxu0 %v265
        %v343 = vpop.f32.mrb[0].mxu0
        %v344 = vadd.f32 %v300, %v343
        %v345 = vpop.f32.mrb[0].mxu0
        %v346 = vpop.f32.mrb[0].mxu0
        %v347 = vadd.f32 %v300, %v346
        %v348 = vpop.f32.mrb[0].mxu0
        %349 = vmatprep.mubr.bf16.mxu0 0
        %350 = vmatmul.mubr.bf16.gmra.mrb[0].mxu0 %v266
        %v351 = vpop.f32.mrb[0].mxu0
        %v352 = vadd.f32 %v300, %v351
        %v353 = vpop.f32.mrb[0].mxu0
        %v354 = vpop.f32.mrb[0].mxu0
        %v355 = vadd.f32 %v300, %v354
        %v356 = vpop.f32.mrb[0].mxu0
        %357 = vmatprep.mubr.bf16.mxu0 0
        %358 = vmatmul.mubr.bf16.gmra.mrb[0].mxu0 %v267
        %v359 = vpop.f32.mrb[0].mxu0
        %v360 = vadd.f32 %v300, %v359
        %v361 = vpop.f32.mrb[0].mxu0
        %v362 = vpop.f32.mrb[0].mxu0
        %v363 = vadd.f32 %v300, %v362
        %v364 = vpop.f32.mrb[0].mxu0
        %365 = vmatprep.mubr.bf16.mxu0 0
        %366 = vmatmul.mubr.bf16.gmra.mrb[0].mxu0 %v268
        %v367 = vpop.f32.mrb[0].mxu0
        %v368 = vadd.f32 %v300, %v367
        %v369 = vpop.f32.mrb[0].mxu0
        %v370 = vpop.f32.mrb[0].mxu0
        %v371 = vadd.f32 %v300, %v370
        %v372 = vpop.f32.mrb[0].mxu0
        %373 = vmatprep.mubr.bf16.mxu0 0
        %374 = vmatmul.mubr.bf16.gmra.mrb[0].mxu0 %v269
        %v375 = vpop.f32.mrb[0].mxu0
        %v376 = vadd.f32 %v300, %v375
        %v377 = vpop.f32.mrb[0].mxu0
        %v378 = vpop.f32.mrb[0].mxu0
        %v379 = vadd.f32 %v300, %v378
        %v380 = vpop.f32.mrb[0].mxu0
        %381 = vmatprep.mubr.bf16.mxu0 0
        %382 = vmatmul.mubr.bf16.gmra.mrb[0].mxu0 %v270
        %v383 = vpop.f32.mrb[0].mxu0
        %v384 = vadd.f32 %v300, %v383
        %v385 = vpop.f32.mrb[0].mxu0
        %v386 = vpop.f32.mrb[0].mxu0
        %v387 = vadd.f32 %v300, %v386
        %v388 = vpop.f32.mrb[0].mxu0
        %389 = vmatprep.mubr.bf16.mxu0 0
        %390 = vmatmul.mubr.bf16.gmra.mrb[0].mxu0 %v271
        %v391 = vpop.f32.mrb[0].mxu0
        %v392 = vadd.f32 %v300, %v391
        %v393 = vpop.f32.mrb[0].mxu0
        %v394 = vpop.f32.mrb[0].mxu0
        %v395 = vadd.f32 %v300, %v394
        %v396 = vpop.f32.mrb[0].mxu0
        %397 = vdwg.mxu0
        %v398 = vmax.f32 %v336, 0.0
        %v399 = vmax.f32 %v339, 0.0
        %v400 = vmax.f32 %v344, 0.0
        %v401 = vmax.f32 %v347, 0.0
        %v402 = vmax.f32 %v352, 0.0
        %v403 = vmax.f32 %v355, 0.0
        %v404 = vmax.f32 %v360, 0.0
        %v405 = vmax.f32 %v363, 0.0
        %v406 = vmax.f32 %v368, 0.0
        %v407 = vmax.f32 %v371, 0.0
        %v408 = vmax.f32 %v376, 0.0
        %v409 = vmax.f32 %v379, 0.0
        %v410 = vmax.f32 %v384, 0.0
        %v411 = vmax.f32 %v387, 0.0
        %v412 = vmax.f32 %v392, 0.0
        %v413 = vmax.f32 %v395, 0.0
        %v414 = vld [vmem:[#allocation7] sm:$0xff]
        %v415 = vld [vmem:[#allocation7 + $0x8] sm:$0xff]
        %v416 = vld [vmem:[#allocation7 + $0x10] sm:$0xff]
        %v417 = vld [vmem:[#allocation7 + $0x18] sm:$0xff]
        %v418 = vld [vmem:[#allocation7 + $0x20] sm:$0xff]
        %v419 = vld [vmem:[#allocation7 + $0x28] sm:$0xff]
        %v420 = vld [vmem:[#allocation7 + $0x30] sm:$0xff]
        %v421 = vld [vmem:[#allocation7 + $0x38] sm:$0xff]
        %v422 = vld [vmem:[#allocation7 + $0x40] sm:$0xff]
        %v423 = vld [vmem:[#allocation7 + $0x48] sm:$0xff]
        %v424 = vld [vmem:[#allocation7 + $0x50] sm:$0xff]
        %v425 = vld [vmem:[#allocation7 + $0x58] sm:$0xff]
        %v426 = vld [vmem:[#allocation7 + $0x60] sm:$0xff]
        %v427 = vld [vmem:[#allocation7 + $0x68] sm:$0xff]
        %v428 = vld [vmem:[#allocation7 + $0x70] sm:$0xff]
        %v429 = vld [vmem:[#allocation7 + $0x78] sm:$0xff]
        %v430 = vpack.c.bf16 %v415, %v414
        %v431 = vpack.c.bf16 %v417, %v416
        %v432 = vpack.c.bf16 %v419, %v418
        %v433 = vpack.c.bf16 %v421, %v420
        %v434 = vpack.c.bf16 %v423, %v422
        %v435 = vpack.c.bf16 %v425, %v424
        %v436 = vpack.c.bf16 %v427, %v426
        %v437 = vpack.c.bf16 %v429, %v428
        %v438 = vpack.c.bf16 %v399, %v398
        %v439 = vpack.c.bf16 %v401, %v400
        %v440 = vpack.c.bf16 %v403, %v402
        %v441 = vpack.c.bf16 %v405, %v404
        %v442 = vpack.c.bf16 %v407, %v406
        %v443 = vpack.c.bf16 %v409, %v408
        %v444 = vpack.c.bf16 %v411, %v410
        %v445 = vpack.c.bf16 %v413, %v412
        %v446 = vld [vmem:[%s2 + $0x1] sm:$0x1]
        %v447 = vlaneseq
        %v448 = vshrl.u32 %v447, 7
        %v449 = vsub.s32 0, %v448
        %v450 = vrot.slane %v446, %v449
        %451 = vmatprep.subr.bf16.mxu0 0
        %452 = vmatpush1.bf16.msra.mxu0 %v430
        %453 = vmatprep.subr.bf16.mxu0 0
        %454 = vmatpush1.bf16.msra.mxu0 %v431
        %455 = vmatprep.subr.bf16.mxu0 0
        %456 = vmatpush1.bf16.msra.mxu0 %v432
        %457 = vmatprep.subr.bf16.mxu0 0
        %458 = vmatpush1.bf16.msra.mxu0 %v433
        %459 = vmatprep.subr.bf16.mxu0 0
        %460 = vmatpush1.bf16.msra.mxu0 %v434
        %461 = vmatprep.subr.bf16.mxu0 0
        %462 = vmatpush1.bf16.msra.mxu0 %v435
        %463 = vmatprep.subr.bf16.mxu0 0
        %464 = vmatpush1.bf16.msra.mxu0 %v436
        %465 = vmatprep.subr.bf16.mxu0 0
        %466 = vmatpush1.bf16.msra.mxu0 %v437
        %467 = vmatprep.subr.bf16.mxu0 0
        %468 = vmatpush1.bf16.msra.mxu0 0
        %469 = vmatprep.subr.bf16.mxu0 0
        %470 = vmatpush1.bf16.msra.mxu0 0
        %471 = vmatprep.subr.bf16.mxu0 0
        %472 = vmatpush1.bf16.msra.mxu0 0
        %473 = vmatprep.subr.bf16.mxu0 0
        %474 = vmatpush1.bf16.msra.mxu0 0
        %475 = vmatprep.subr.bf16.mxu0 0
        %476 = vmatpush1.bf16.msra.mxu0 0
        %477 = vmatprep.subr.bf16.mxu0 0
        %478 = vmatpush1.bf16.msra.mxu0 0
        %479 = vmatprep.subr.bf16.mxu0 0
        %480 = vmatpush1.bf16.msra.mxu0 0
        %481 = vmatprep.subr.bf16.mxu0 0
        %482 = vmatpush1.bf16.msra.mxu0 0
        %483 = vmatprep.mubr.bf16.mxu0 0
        %484 = vmatmul.mubr.bf16.gmra.mrb[0].mxu0 %v438
        %v485 = vpop.f32.mrb[0].mxu0
        %v486 = vadd.f32 %v450, %v485
        %v487 = vpop.f32.mrb[0].mxu0
        %v488 = vpop.f32.mrb[0].mxu0
        %v489 = vadd.f32 %v450, %v488
        %v490 = vpop.f32.mrb[0].mxu0
        %491 = vmatprep.mubr.bf16.mxu0 0
        %492 = vmatmul.mubr.bf16.gmra.mrb[0].mxu0 %v439
        %v493 = vpop.f32.mrb[0].mxu0
        %v494 = vadd.f32 %v450, %v493
        %v495 = vpop.f32.mrb[0].mxu0
        %v496 = vpop.f32.mrb[0].mxu0
        %v497 = vadd.f32 %v450, %v496
        %v498 = vpop.f32.mrb[0].mxu0
        %499 = vmatprep.mubr.bf16.mxu0 0
        %500 = vmatmul.mubr.bf16.gmra.mrb[0].mxu0 %v440
        %v501 = vpop.f32.mrb[0].mxu0
        %v502 = vadd.f32 %v450, %v501
        %v503 = vpop.f32.mrb[0].mxu0
        %v504 = vpop.f32.mrb[0].mxu0
        %v505 = vadd.f32 %v450, %v504
        %v506 = vpop.f32.mrb[0].mxu0
        %507 = vmatprep.mubr.bf16.mxu0 0
        %508 = vmatmul.mubr.bf16.gmra.mrb[0].mxu0 %v441
        %v509 = vpop.f32.mrb[0].mxu0
        %v510 = vadd.f32 %v450, %v509
        %v511 = vpop.f32.mrb[0].mxu0
        %v512 = vpop.f32.mrb[0].mxu0
        %v513 = vadd.f32 %v450, %v512
        %v514 = vpop.f32.mrb[0].mxu0
        %515 = vmatprep.mubr.bf16.mxu0 0
        %516 = vmatmul.mubr.bf16.gmra.mrb[0].mxu0 %v442
        %v517 = vpop.f32.mrb[0].mxu0
        %v518 = vadd.f32 %v450, %v517
        %v519 = vpop.f32.mrb[0].mxu0
        %v520 = vpop.f32.mrb[0].mxu0
        %v521 = vadd.f32 %v450, %v520
        %v522 = vpop.f32.mrb[0].mxu0
        %523 = vmatprep.mubr.bf16.mxu0 0
        %524 = vmatmul.mubr.bf16.gmra.mrb[0].mxu0 %v443
        %v525 = vpop.f32.mrb[0].mxu0
        %v526 = vadd.f32 %v450, %v525
        %v527 = vpop.f32.mrb[0].mxu0
        %v528 = vpop.f32.mrb[0].mxu0
        %v529 = vadd.f32 %v450, %v528
        %v530 = vpop.f32.mrb[0].mxu0
        %531 = vmatprep.mubr.bf16.mxu0 0
        %532 = vmatmul.mubr.bf16.gmra.mrb[0].mxu0 %v444
        %v533 = vpop.f32.mrb[0].mxu0
        %v534 = vadd.f32 %v450, %v533
        %v535 = vpop.f32.mrb[0].mxu0
        %v536 = vpop.f32.mrb[0].mxu0
        %v537 = vadd.f32 %v450, %v536
        %v538 = vpop.f32.mrb[0].mxu0
        %539 = vmatprep.mubr.bf16.mxu0 0
        %540 = vmatmul.mubr.bf16.gmra.mrb[0].mxu0 %v445
        %v541 = vpop.f32.mrb[0].mxu0
        %v542 = vadd.f32 %v450, %v541
        %v543 = vpop.f32.mrb[0].mxu0
        %v544 = vpop.f32.mrb[0].mxu0
        %v545 = vadd.f32 %v450, %v544
        %v546 = vpop.f32.mrb[0].mxu0
        %547 = vdwg.mxu0
        %548 = vst [vmem:[%s244] sm:$0xff] %v486
        %549 = vst [vmem:[%s244 + $0x8] sm:$0xff] %v489
        %550 = vst [vmem:[%s244 + $0x10] sm:$0xff] %v494
        %551 = vst [vmem:[%s244 + $0x18] sm:$0xff] %v497
        %552 = vst [vmem:[%s244 + $0x20] sm:$0xff] %v502
        %553 = vst [vmem:[%s244 + $0x28] sm:$0xff] %v505
        %554 = vst [vmem:[%s244 + $0x30] sm:$0xff] %v510
        %555 = vst [vmem:[%s244 + $0x38] sm:$0xff] %v513
        %556 = vst [vmem:[%s244 + $0x40] sm:$0xff] %v518
        %557 = vst [vmem:[%s244 + $0x48] sm:$0xff] %v521
        %558 = vst [vmem:[%s244 + $0x50] sm:$0xff] %v526
        %559 = vst [vmem:[%s244 + $0x58] sm:$0xff] %v529
        %560 = vst [vmem:[%s244 + $0x60] sm:$0xff] %v534
        %561 = vst [vmem:[%s244 + $0x68] sm:$0xff] %v537
        %562 = vst [vmem:[%s244 + $0x70] sm:$0xff] %v542
        %563 = vst [vmem:[%s244 + $0x78] sm:$0xff] %v545
        %s564 = sand.u32 %s119, 1
        %s565 = scalar_lea.sflag [#allocation4], %s564
        %s566 = sand.u32 %s119, 1
        %s567 = smul.addr %s566, 128
        %s568 = scalar_lea.vmem [#allocation8], %s567
        // Predicated region
        $region49: #{tpu_custom_call.1} parent=35 // pred_check
          %p569 = pneg %p129
        $region50: #{tpu_custom_call.1} parent=35 // pred_check_branch
          %571 = sbr.rel (%p569) target = $region52
        $region51: #{tpu_custom_call.1} parent=35 // pred_region
          %s572 = smul.u32 16, %s22
          %s574 = ssub.s32 2048, 2048
          %575 = vsyncadd %s565, %s574
          %s576 = smul.addr %s572, 128
          %s577 = scalar_lea.hbm %s4, %s576
          %s578 = sshll.u32 %s568, 4
          %s579 = int_to_ptr.vmem [resolvable:$true] %s578
          %584 = dma.vmem_to_hbm [thread:$0]  %s579, 2048, %s577, %s565, 128, 128, 8
        $region52: #{tpu_custom_call.1} parent=35 // pred_fallthru
          _
      $region36: #{tpu_custom_call.1} parent=5 // pred_fallthru
        _
      %p585 = scmp.le.s32.totalorder 2, %s17
      // Predicated region
      $region53: #{tpu_custom_call.1} parent=5 // pred_check
        %p586 = pneg %p585
      $region54: #{tpu_custom_call.1} parent=5 // pred_check_branch
        %588 = sbr.rel (%p586) target = $region56
      $region55: #{tpu_custom_call.1} parent=5 // pred_region
        %s589 = ssub.s32 %s17, 2
        // Predicated region
        $region57: #{tpu_custom_call.1} parent=55 // pred_check
          %p590 = pneg %p135
        $region58: #{tpu_custom_call.1} parent=55 // pred_check_branch
          %592 = sbr.rel (%p590) target = $region60
        $region59: #{tpu_custom_call.1} parent=55 // pred_region
          %s593 = sand.u32 %s120, 1
          %s594 = scalar_lea.sflag [#allocation4], %s593
          %s595 = sand.u32 %s120, 1
          %s596 = smul.addr %s595, 128
          %s597 = scalar_lea.vmem [#allocation8], %s596
          %598 = dma.done %s594, 2048
        $region60: #{tpu_custom_call.1} parent=55 // pred_fallthru
          _
      $region56: #{tpu_custom_call.1} parent=5 // pred_fallthru
        _
    $region6: #{tpu_custom_call.1} parent=1 // loop_footer
      %s21 = sadd.s32 1, %s17
    $region7: #{tpu_custom_call.1} parent=1 // loop_footer_branch
      %16 = sbr.rel target = $region3
    $region8: #{tpu_custom_call.1} parent=1 // loop_exit
      _
    %599 = vsyncpa [#allocation3], 1
    %s600 = scalar_lea.sflag [#allocation3], 1
    %601 = vsyncpa %s600, 1
    %602 = vsyncpa [#allocation6], 1
    %603 = vsyncpa [#allocation4], 1
    %s604 = scalar_lea.sflag [#allocation4], 1
    %605 = vsyncpa %s604, 1

</llo_original>
